<compile_context>
chip_gen: v7x
topology: tpu7x:2x2x1
jax: 0.10.0
libtpu: 0.0.40
codegen_flags: <defaults>
</compile_context>

<pallas_src>
import jax
import jax.numpy as jnp
from jax import lax
from jax.experimental import pallas as pl
from jax.experimental.pallas import tpu as pltpu


def _round_up(x, m):
    return ((x + m - 1) // m) * m


# ----------------------------------------------------------------------------
# Kernels
# ----------------------------------------------------------------------------

def _unpool_gather_kernel(inv_ref, x_ref, out_ref):
    """Memory-bound path: in-VMEM dynamic row gather.

    inv_ref : VMEM int32 (rows_tile, 1)  source row of X per output row, -1 = zero row
    x_ref   : VMEM (M, f_tile)           pooled node features (feature slab)
    out_ref : VMEM (rows_tile, f_tile)   unpooled node features (output tile)
    """
    inv = inv_ref[...]                                    # (rows_tile, 1)
    m = x_ref.shape[0]
    src = jnp.clip(inv[:, 0], 0, m - 1)                   # (rows_tile,), in-bounds
    # Dynamic gather of whole rows from the VMEM-resident X slab (no MXU work,
    # no O(rows*M) one-hot temporaries).
    rows = x_ref[...].at[src].get(mode="promise_in_bounds")
    out_ref[...] = jnp.where(inv >= 0, rows, jnp.zeros_like(rows)).astype(out_ref.dtype)


def _unpool_onehot_kernel(inv_ref, x_ref, out_ref):
    """Fallback path: exact one-hot gather on the MXU (always lowers)."""
    inv = inv_ref[...]                                    # (rows_tile, 1)
    m = x_ref.shape[0]
    col = lax.broadcasted_iota(jnp.int32, (inv.shape[0], m), 1)
    hit = inv == col                                      # all-zero row when inv == -1
    if x_ref.dtype == jnp.bfloat16:
        # 0/1 one-hot is exact in bf16 -> a single native bf16 MXU pass is exact.
        gathered = jnp.dot(hit.astype(jnp.bfloat16), x_ref[...],
                           preferred_element_type=jnp.float32)
    else:
        gathered = jnp.dot(hit.astype(jnp.float32),
                           x_ref[...].astype(jnp.float32),
                           preferred_element_type=jnp.float32,
                           precision=lax.Precision.HIGHEST)  # exact f32 copy
    out_ref[...] = gathered.astype(out_ref.dtype)


# ----------------------------------------------------------------------------
# Wrapper
# ----------------------------------------------------------------------------

def _vmem_capacity_bytes():
    try:
        return int(pltpu.get_tpu_info().vmem_capacity_bytes)
    except Exception:
        return 64 * 1024 * 1024  # conservative: v7x per-TensorCore VMEM


def _pick_tiles(N, M, F, itemsize, use_gather, rows_tile, f_tile):
    cap = _vmem_capacity_bytes()
    if cap >= 96 * 1024 * 1024:        # v5e / v6e: 128 MiB physical VMEM
        budget = 24 * 1024 * 1024
        vmem_limit = 48 * 1024 * 1024
    else:                              # v7x: 64 MiB per TensorCore
        budget = 16 * 1024 * 1024
        vmem_limit = 32 * 1024 * 1024

    rows_tile = _round_up(min(rows_tile, _round_up(N, 8)), 8)
    f_tile = _round_up(min(f_tile, _round_up(F, 128)), 128)
    m_rows = M if use_gather else _round_up(M, 128)   # lane-aligned contraction for MXU

    def working_set(rt, ft):
        x_blk = 2 * m_rows * ft * itemsize            # double-buffered X slab
        out_blk = 2 * rt * ft * itemsize              # double-buffered output tile
        inv_blk = 2 * rt * 4
        temps = 2 * rt * ft * 4 + rt * 4              # gathered rows / select / indices
        if not use_gather:
            temps += rt * m_rows * 4 + m_rows * ft * 4 + rt * ft * 4  # one-hot, f32 X, acc
        return x_blk + out_blk + inv_blk + temps

    while f_tile > 128 and working_set(rows_tile, f_tile) > budget:
        f_tile = max(128, (f_tile // 2) // 128 * 128)
    while rows_tile > 8 and working_set(rows_tile, f_tile) > budget:
        rows_tile = max(8, (rows_tile // 2) // 8 * 8)
    return rows_tile, f_tile, m_rows, vmem_limit


def _unpool_pallas(inv, X, N, *, use_gather, rows_tile, f_tile):
    M, F = X.shape
    itemsize = jnp.dtype(X.dtype).itemsize
    rows_tile, f_tile, m_rows, vmem_limit = _pick_tiles(
        N, M, F, itemsize, use_gather, rows_tile, f_tile)

    n_row_blocks = pl.cdiv(N, rows_tile)
    n_f_blocks = pl.cdiv(F, f_tile)
    n_pad = n_row_blocks * rows_tile

    # Pad only the tiny index vector (with -1 = "stays zero"); the big N x F
    # output is emitted unpadded and Pallas masks the ragged edge blocks.
    inv2d = inv.reshape(N, 1)
    if n_pad != N:
        inv2d = jnp.pad(inv2d, ((0, n_pad - N), (0, 0)), constant_values=-1)

    Xp = X
    if not use_gather:
        # MXU fallback: zero-pad the (small) pooled feature matrix so the
        # contraction dim is lane aligned and padded values are exactly zero.
        f_pad = n_f_blocks * f_tile
        if (m_rows, f_pad) != (M, F):
            Xp = jnp.pad(X, ((0, m_rows - M), (0, f_pad - F)))

    kernel = _unpool_gather_kernel if use_gather else _unpool_onehot_kernel
    x_rows = Xp.shape[0]

    flops = N * F if use_gather else 2 * N * x_rows * F
    bytes_accessed = (N * F + Xp.shape[0] * Xp.shape[1]) * itemsize + n_pad * 4

    grid = (n_f_blocks, n_row_blocks)  # f outermost -> X feature slab stays resident

    return pl.pallas_call(
        kernel,
        out_shape=jax.ShapeDtypeStruct((N, F), X.dtype),
        grid_spec=pltpu.PrefetchScalarGridSpec(
            num_scalar_prefetch=0,
            grid=grid,
            in_specs=[
                pl.BlockSpec((rows_tile, 1), lambda f, r: (r, 0)),    # inv
                pl.BlockSpec((x_rows, f_tile), lambda f, r: (0, f)),  # X slab
            ],
            out_specs=pl.BlockSpec((rows_tile, f_tile), lambda f, r: (r, f)),
        ),
        compiler_params=pltpu.CompilerParams(
            dimension_semantics=("parallel", "parallel"),
            vmem_limit_bytes=vmem_limit,
        ),
        cost_estimate=pl.CostEstimate(
            flops=int(flops), transcendentals=0, bytes_accessed=int(bytes_accessed)),
    )(inv2d, Xp)


_GATHER_SUPPORTED = None  # resolved on first call


def graph_unpool(A, X, idx, *, rows_tile=512, f_tile=1024):
    """Pallas implementation of GraphUnpool.forward(A, X, idx) -> (A, new_X)."""
    global _GATHER_SUPPORTED
    N = A.shape[0]
    M, _ = X.shape
    idx = idx.astype(jnp.int32)

    # Inverse map: output row -> source row of X (-1 = row stays zero).
    # NOTE: PyTorch's `new_X[idx] = X` is last-write-wins for duplicate idx;
    # `.at[idx].set(...)` leaves the winner unspecified.  The module assumes
    # distinct indices (top-k pooling), so this does not matter in practice.
    inv = jnp.full((N,), -1, dtype=jnp.int32).at[idx].set(
        jnp.arange(M, dtype=jnp.int32))

    new_X = None
    if _GATHER_SUPPORTED is not False:
        try:
            new_X = _unpool_pallas(inv, X, N, use_gather=True,
                                   rows_tile=rows_tile, f_tile=f_tile)
            new_X = jax.block_until_ready(new_X)
            _GATHER_SUPPORTED = True
        except Exception:
            # Vector gather did not lower on this Mosaic version: fall back to
            # the exact one-hot MXU formulation.
            _GATHER_SUPPORTED = False
            new_X = None
    if new_X is None:
        new_X = _unpool_pallas(inv, X, N, use_gather=False,
                               rows_tile=rows_tile, f_tile=f_tile)

    # A is returned unchanged, exactly as in the reference module.
    return A, new_X


if __name__ == "__main__":
    key = jax.random.PRNGKey(0)
    k_a, k_x, k_idx = jax.random.split(key, 3)

    # Small, deliberately unaligned shapes (exercise ragged edges + multi-tile grid).
    N = 50    # nodes after unpooling (A.shape[0])
    M = 20    # pooled nodes (X.shape[0])
    F = 200   # feature dimension (X.shape[1])

    A = jax.random.normal(k_a, (N, N), dtype=jnp.float32)
    X = jax.random.normal(k_x, (M, F), dtype=jnp.float32)
    # Distinct destination indices (as the PyTorch module assumes).
    idx = jax.random.permutation(k_idx, N)[:M].astype(jnp.int32)

    # Small tiles so the example runs a real multi-tile grid (2 x 4).
    A_out, new_X = graph_unpool(A, X, idx, rows_tile=16, f_tile=128)
    jax.block_until_ready((A_out, new_X))

    # Reference: plain-JAX scatter semantics of `new_X[idx] = X`.
    ref = jnp.zeros((N, F), dtype=X.dtype).at[idx].set(X)
    assert A_out.shape == (N, N) and new_X.shape == (N, F)
    assert jnp.array_equal(A_out, A)
    assert jnp.allclose(new_X, ref, rtol=1e-6, atol=1e-6)

    print("KERNEL_OK")
</pallas_src>

<mosaic_0001>
module attributes {stable_mosaic.version = 11 : i64} {
  func.func @_unpool_onehot_kernel(%arg0: i32, %arg1: i32, %arg2: memref<16x1xi32, #tpu.memory_space<vmem>>, %arg3: memref<128x128xf32, #tpu.memory_space<vmem>>, %arg4: memref<16x128xf32, #tpu.memory_space<vmem>>) attributes {dimension_semantics = [#tpu.dimension_semantics<parallel>, #tpu.dimension_semantics<parallel>], iteration_bounds = array<i64: 2, 4>, scalar_prefetch = 0 : i64, scratch_operands = 0 : i64, tpu.core_type = #tpu.core_type<tc>, window_params = [{transform_indices = @transform_0, window_bounds = array<i64: 16, 1>}, {transform_indices = @transform_1, window_bounds = array<i64: 128, 128>}, {transform_indices = @transform_2, window_bounds = array<i64: 16, 128>}]} {
    %c0 = arith.constant 0 : index
    %c0_0 = arith.constant 0 : index
    %0 = vector.load %arg2[%c0, %c0_0] : memref<16x1xi32, #tpu.memory_space<vmem>>, vector<16x1xi32>
    %1 = tpu.iota {dimensions = array<i32: 1>} : vector<16x128xi32>
    %2 = vector.broadcast %0 : vector<16x1xi32> to vector<16x128xi32>
    %3 = arith.cmpi eq, %2, %1 : vector<16x128xi32>
    %4 = arith.extui %3 : vector<16x128xi1> to vector<16x128xi32>
    %5 = arith.sitofp %4 : vector<16x128xi32> to vector<16x128xf32>
    %c0_1 = arith.constant 0 : index
    %c0_2 = arith.constant 0 : index
    %6 = vector.load %arg3[%c0_1, %c0_2] : memref<128x128xf32, #tpu.memory_space<vmem>>, vector<128x128xf32>
    %cst = arith.constant dense<0.000000e+00> : vector<16x128xf32>
    %7 = tpu.matmul %5, %6, %cst {dimension_numbers = #tpu.dot_dimension_numbers<[1], [0], [0], [1], [0, 0, 1, 1], [], []>, precision = #tpu.contract_precision<fp32>} : vector<16x128xf32>, vector<128x128xf32>, vector<16x128xf32> -> vector<16x128xf32>
    %c0_3 = arith.constant 0 : index
    %c0_4 = arith.constant 0 : index
    %8 = vector.load %arg4[%c0_3, %c0_4] : memref<16x128xf32, #tpu.memory_space<vmem>>, vector<16x128xf32>
    tpu.vector_store %arg4[%c0_3, %c0_4], %7 {strides = array<i32>} : memref<16x128xf32, #tpu.memory_space<vmem>>, vector<16x128xf32>,
    return
  }
  func.func @transform_0(%arg0: i32, %arg1: i32) -> (i32, i32) {
    %c0_i32 = arith.constant 0 : i32
    %c0_i32_0 = arith.constant 0 : i32
    return %arg1, %c0_i32 : i32, i32
  }
  func.func @transform_1(%arg0: i32, %arg1: i32) -> (i32, i32) {
    %c0_i32 = arith.constant 0 : i32
    %c0_i32_0 = arith.constant 0 : i32
    return %c0_i32, %arg0 : i32, i32
  }
  func.func @transform_2(%arg0: i32, %arg1: i32) -> (i32, i32) {
    %c0_i32 = arith.constant 0 : i32
    return %arg1, %arg0 : i32, i32
  }
}

</mosaic_0001>

<llo_original>
// kernel: tpu_custom_call.1
$region0: #{tpu_custom_call.1}
  #allocation0 [shape = 'u32[]', space=smem, size = 0x4, offset = 0x4, fixed_abs, tag = 'smem constant byte address 0x4 - core index']
  #allocation1 [shape = 'u32[144,128]{1,0:T(1,128)}', space=vmem, size = 0x12000, scoped, tag = 'internal scratch']
  %s0 = inlined_call_operand.vmem [shape: s32[64,1], index: 0, kind: input, shape index: {}]
  %s1 = inlined_call_operand.hbm [shape: f32[128,256], index: 1, kind: input, shape index: {}]
  %s2 = inlined_call_operand.hbm [shape: f32[50,200], index: 2, kind: output, shape index: {}]
  %s3 = sld [smem:[#allocation0]]
  $region45: #{tpu_custom_call.1} parent=0
    _
  %s5 = ssub.s32 1, %s3
  %s6 = scalar_select 0, %s5, %s3
  $region1: #{tpu_custom_call.1} parent=0
    #allocation2 [shape = 'u8[131072]{0}', space=vmem, size = 0x20000, scoped, tag = 'input window, operand 1']
    #allocation3 [shape = 's32[2]{0}', space=sflag, size = 0x8, scoped, tag = 'scoped memory for tpu_custom_call.1']
    #allocation4 [shape = 's32[2]{0}', space=sflag, size = 0x8, scoped, tag = 'scoped memory for tpu_custom_call.1']
    #allocation5 [shape = 'u8[16384]{0}', space=vmem, size = 0x4000, scoped, tag = 'output window, operand 0']
    %7 = vsyncpa [#allocation3], 0
    %s8 = scalar_lea.sflag [#allocation3], 1
    %9 = vsyncpa %s8, 0
    %10 = vsyncpa [#allocation4], 0
    %s11 = scalar_lea.sflag [#allocation4], 1
    %12 = vsyncpa %s11, 0
    loop: start=0, step=1, limit=10
    $region2: #{tpu_custom_call.1} parent=1 // loop_pre_header
      _
    $region3: #{tpu_custom_call.1} parent=1 // loop_header
      %s14 = sphi 0, %s18
      %p15 = scmp.ge.s32.totalorder %s14, 10
      %s21 = sphi 0, %s33
      %s22 = sphi 0, %s29
      %s23 = sphi 0, %s21
      %s24 = sphi 0, %s22
      %s25 = sphi 0, %s23
      %s26 = sphi 0, %s24
      %s36 = sphi 0, %s38
      %s39 = sphi 0, %s36
      %s40 = sphi 0, %s39
      %s56 = sphi 0, %s40
      %s62 = sphi 0, %s64
      %s65 = sphi 0, %s62
      %s66 = sphi 0, %s65
      %s82 = sphi 0, %s66
      %s90 = sphi 0, %s92
      %s93 = sphi 0, %s90
      %s94 = sphi 0, %s93
      %s110 = sphi 0, %s94
    $region4: #{tpu_custom_call.1} parent=1 // loop_header_branch
      %17 = sbr.rel (%p15) target = $region8
    $region5: #{tpu_custom_call.1} parent=1 // loop_body
      %s19 = ssub.s32 %s14, 1
      %s20 = ssub.s32 %s14, 2
      %s27 = sadd.s32 1, %s22
      %p28 = scmp.ge.s32.totalorder %s27, 4
      %s29 = scalar_select %p28, 0, %s27
      %s30 = sadd.s32 1, %s21
      %s31 = scalar_select %p28, %s30, %s21
      %p32 = scmp.ge.s32.totalorder %s31, 2
      %s33 = scalar_select %p32, 0, %s31
      %s34 = ssub.s32 %s22, %s29
      %p35 = scmp.eq.s32.totalorder %s34, 0
      %s37 = sadd.s32 %s36, 1
      %s38 = scalar_select %p35, %s36, %s37
      %p41 = pneg %p35
      %p42 = scmp.eq.s32.totalorder %s14, 7
      %p43 = por %p41, %p42
      %p44 = scmp.ne.s32.totalorder %s36, %s39
      %p45 = scmp.eq.s32.totalorder %s14, 0
      %p46 = por %p44, %p45
      %p47 = scmp.ne.s32.totalorder %s36, %s39
      %p48 = scmp.eq.s32.totalorder %s19, 7
      %p49 = por %p47, %p48
      %p50 = scmp.ne.s32.totalorder %s39, %s40
      %p51 = scmp.eq.s32.totalorder %s19, 0
      %p52 = por %p50, %p51
      %p53 = scmp.ne.s32.totalorder %s39, %s40
      %p54 = scmp.eq.s32.totalorder %s20, 7
      %p55 = por %p53, %p54
      %p57 = scmp.ne.s32.totalorder %s40, %s56
      %p58 = scmp.eq.s32.totalorder %s20, 0
      %p59 = por %p57, %p58
      %s60 = ssub.s32 %s21, %s33
      %p61 = scmp.eq.s32.totalorder %s60, 0
      %s63 = sadd.s32 %s62, 1
      %s64 = scalar_select %p61, %s62, %s63
      %p67 = pneg %p61
      %p68 = scmp.eq.s32.totalorder %s14, 7
      %p69 = por %p67, %p68
      %p70 = scmp.ne.s32.totalorder %s62, %s65
      %p71 = scmp.eq.s32.totalorder %s14, 0
      %p72 = por %p70, %p71
      %p73 = scmp.ne.s32.totalorder %s62, %s65
      %p74 = scmp.eq.s32.totalorder %s19, 7
      %p75 = por %p73, %p74
      %p76 = scmp.ne.s32.totalorder %s65, %s66
      %p77 = scmp.eq.s32.totalorder %s19, 0
      %p78 = por %p76, %p77
      %p79 = scmp.ne.s32.totalorder %s65, %s66
      %p80 = scmp.eq.s32.totalorder %s20, 7
      %p81 = por %p79, %p80
      %p83 = scmp.ne.s32.totalorder %s66, %s82
      %p84 = scmp.eq.s32.totalorder %s20, 0
      %p85 = por %p83, %p84
      %s86 = ssub.s32 %s22, %s29
      %s87 = ssub.s32 %s21, %s33
      %s88 = sor.u32 %s86, %s87
      %p89 = scmp.eq.s32.totalorder %s88, 0
      %s91 = sadd.s32 %s90, 1
      %s92 = scalar_select %p89, %s90, %s91
      %p95 = pneg %p89
      %p96 = scmp.eq.s32.totalorder %s14, 7
      %p97 = por %p95, %p96
      %p98 = scmp.ne.s32.totalorder %s90, %s93
      %p99 = scmp.eq.s32.totalorder %s14, 0
      %p100 = por %p98, %p99
      %p101 = scmp.ne.s32.totalorder %s90, %s93
      %p102 = scmp.eq.s32.totalorder %s19, 7
      %p103 = por %p101, %p102
      %p104 = scmp.ne.s32.totalorder %s93, %s94
      %p105 = scmp.eq.s32.totalorder %s19, 0
      %p106 = por %p104, %p105
      %p107 = scmp.ne.s32.totalorder %s93, %s94
      %p108 = scmp.eq.s32.totalorder %s20, 7
      %p109 = por %p107, %p108
      %p111 = scmp.ne.s32.totalorder %s94, %s110
      %p112 = scmp.eq.s32.totalorder %s20, 0
      %p113 = por %p111, %p112
      %p114 = scmp.le.s32.totalorder 1, %s14
      %p115 = scmp.lt.s32.totalorder %s14, 9
      %p116 = pnand %p114, %p115
      %p117 = pneg %p116
      // Predicated region
      $region9: #{tpu_custom_call.1} parent=5 // pred_check
        _
      $region10: #{tpu_custom_call.1} parent=5 // pred_check_branch
        %119 = sbr.rel (%p116) target = $region12
      $region11: #{tpu_custom_call.1} parent=5 // pred_region
        %s120 = ssub.s32 %s14, 1
      $region12: #{tpu_custom_call.1} parent=5 // pred_fallthru
        _
      %p121 = scmp.lt.s32.totalorder %s14, 8
      // Predicated region
      $region13: #{tpu_custom_call.1} parent=5 // pred_check
        %p122 = pneg %p121
      $region14: #{tpu_custom_call.1} parent=5 // pred_check_branch
        %124 = sbr.rel (%p122) target = $region16
      $region15: #{tpu_custom_call.1} parent=5 // pred_region
        // Predicated region
        $region17: #{tpu_custom_call.1} parent=15 // pred_check
          %p125 = pneg %p46
        $region18: #{tpu_custom_call.1} parent=15 // pred_check_branch
          %127 = sbr.rel (%p125) target = $region20
        $region19: #{tpu_custom_call.1} parent=15 // pred_region
          %s128 = smul.u32 2, %s22
          %p129 = scmp.lt.s32.totalorder %s128, 7
          %s130 = scalar_select %p129, %s128, 7
          %s131 = smul.addr %s130, 8
          %s132 = scalar_lea.vmem %s0, %s131
          %s133 = smul.u32 2, %s22
        $region20: #{tpu_custom_call.1} parent=15 // pred_fallthru
          _
        // Predicated region
        $region21: #{tpu_custom_call.1} parent=15 // pred_check
          %p134 = pneg %p72
        $region22: #{tpu_custom_call.1} parent=15 // pred_check_branch
          %136 = sbr.rel (%p134) target = $region24
        $region23: #{tpu_custom_call.1} parent=15 // pred_region
          %s137 = sand.u32 %s62, 1
          %s138 = scalar_lea.sflag [#allocation3], %s137
          %s139 = sand.u32 %s62, 1
          %s140 = smul.addr %s139, 128
          %s141 = scalar_lea.vmem [#allocation2], %s140
          %s143 = ssub.s32 2048, 2048
          %144 = vsyncadd %s138, %s143
          %s145 = smul.addr %s21, 128
          %s146 = scalar_lea.hbm %s1, %s145
          %s147 = sshll.u32 %s141, 4
          %s148 = int_to_ptr.vmem [resolvable:$true] %s147
          %153 = dma.hbm_to_vmem [thread:$0]  %s146, 2048, %s148, %s138, 256, 128, 8
        $region24: #{tpu_custom_call.1} parent=15 // pred_fallthru
          _
      $region16: #{tpu_custom_call.1} parent=5 // pred_fallthru
        _
      %p154 = scmp.le.s32.totalorder 1, %s14
      %p155 = scmp.lt.s32.totalorder %s14, 9
      %p156 = pnand %p154, %p155
      %p157 = pneg %p156
      // Predicated region
      $region25: #{tpu_custom_call.1} parent=5 // pred_check
        _
      $region26: #{tpu_custom_call.1} parent=5 // pred_check_branch
        %159 = sbr.rel (%p156) target = $region28
      $region27: #{tpu_custom_call.1} parent=5 // pred_region
        %s160 = ssub.s32 %s14, 1
        %s161 = sand.u32 %s65, 1
        %s162 = scalar_lea.sflag [#allocation3], %s161
        %s163 = sand.u32 %s65, 1
        %s164 = smul.addr %s163, 128
        %s165 = scalar_lea.vmem [#allocation2], %s164
        // Predicated region
        $region29: #{tpu_custom_call.1} parent=27 // pred_check
          %p166 = pneg %p78
        $region30: #{tpu_custom_call.1} parent=27 // pred_check_branch
          %168 = sbr.rel (%p166) target = $region32
        $region31: #{tpu_custom_call.1} parent=27 // pred_region
          %169 = dma.done %s162, 2048
        $region32: #{tpu_custom_call.1} parent=27 // pred_fallthru
          _
        %s170 = smul.u32 2, %s24
        %p171 = scmp.lt.s32.totalorder %s170, 7
        %s172 = scalar_select %p171, %s170, 7
        %s173 = smul.addr %s172, 8
        %s174 = scalar_lea.vmem %s0, %s173
        %p175 = pneg %p52
        %p176 = pneg %p49
        %s177 = sand.u32 %s65, 1
        %s178 = scalar_lea.sflag [#allocation3], %s177
        %s179 = sand.u32 %s65, 1
        %s180 = smul.addr %s179, 128
        %s181 = scalar_lea.vmem [#allocation2], %s180
        %p182 = pneg %p78
        %p183 = pneg %p75
        %p184 = pneg %p106
        %p185 = pneg %p103
        %s186 = sand.u32 %s93, 1
        %s187 = scalar_lea.sflag [#allocation4], %s186
        %s188 = sand.u32 %s93, 1
        %s189 = smul.addr %s188, 16
        %s190 = scalar_lea.vmem [#allocation5], %s189
        %s191 = smul.u32 2, %s24
        %p192 = scmp.lt.s32.totalorder %s191, 7
        %s193 = scalar_select %p192, %s191, 7
        %s194 = smul.addr %s193, 8
        %s195 = scalar_lea.vmem %s0, %s194
        %s196 = smul.u32 2, %s24
        %s197 = smul.u32 2, %s24
        %s198 = ssub.s32 7, %s197
        %p199 = scmp.lt.s32.totalorder %s198, 2
        %s200 = scalar_select %p199, %s198, 2
        %s201 = smul.u32 128, %s200
        %v202 = vld [vmem:[%s195] sm:$0xff]
        %v203 = vld [vmem:[%s195 + $0x8] sm:$0xff]
        %v204 = vlaneseq
        %v205 = vand.u32 %v204, 127
        %206 = vset.pattern.permute.xlu0 0
        %207 = vperm.xlu0 %206, %v202
        %v208 = vpop.permute.xlu0 %207
        %209 = vset.pattern.permute.xlu0 0
        %210 = vperm.xlu0 %209, %v203
        %v211 = vpop.permute.xlu0 %210
        %vm212 = vcmp.eq.s32.totalorder %v208, %v205
        %vm213 = vcmp.eq.s32.totalorder %v211, %v205
        %v214 = vsel %vm212, 1, 0
        %v215 = vsel %vm213, 1, 0
        %v216 = vcvt.s32.f32 %v214
        %v217 = vcvt.s32.f32 %v215
        %v218 = vld [vmem:[%s165] sm:$0xff]
        %v219 = vld [vmem:[%s165 + $0x8] sm:$0xff]
        %v220 = vld [vmem:[%s165 + $0x10] sm:$0xff]
        %v221 = vld [vmem:[%s165 + $0x18] sm:$0xff]
        %v222 = vld [vmem:[%s165 + $0x20] sm:$0xff]
        %v223 = vld [vmem:[%s165 + $0x28] sm:$0xff]
        %v224 = vld [vmem:[%s165 + $0x30] sm:$0xff]
        %v225 = vld [vmem:[%s165 + $0x38] sm:$0xff]
        %v226 = vld [vmem:[%s165 + $0x40] sm:$0xff]
        %v227 = vld [vmem:[%s165 + $0x48] sm:$0xff]
        %v228 = vld [vmem:[%s165 + $0x50] sm:$0xff]
        %v229 = vld [vmem:[%s165 + $0x58] sm:$0xff]
        %v230 = vld [vmem:[%s165 + $0x60] sm:$0xff]
        %v231 = vld [vmem:[%s165 + $0x68] sm:$0xff]
        %v232 = vld [vmem:[%s165 + $0x70] sm:$0xff]
        %v233 = vld [vmem:[%s165 + $0x78] sm:$0xff]
        %234 = vmatprep.subr.mxu0 0.0
        %v235 = vand.u32 %v218, 4294901760
        %236 = vmatpush1.msra.mxu0 %v235
        %237 = vmatprep.subr.mxu0 0.0
        %v238 = vand.u32 %v219, 4294901760
        %239 = vmatpush1.msra.mxu0 %v238
        %240 = vmatprep.subr.mxu0 0.0
        %v241 = vand.u32 %v220, 4294901760
        %242 = vmatpush1.msra.mxu0 %v241
        %243 = vmatprep.subr.mxu0 0.0
        %v244 = vand.u32 %v221, 4294901760
        %245 = vmatpush1.msra.mxu0 %v244
        %246 = vmatprep.subr.mxu0 0.0
        %v247 = vand.u32 %v222, 4294901760
        %248 = vmatpush1.msra.mxu0 %v247
        %249 = vmatprep.subr.mxu0 0.0
        %v250 = vand.u32 %v223, 4294901760
        %251 = vmatpush1.msra.mxu0 %v250
        %252 = vmatprep.subr.mxu0 0.0
        %v253 = vand.u32 %v224, 4294901760
        %254 = vmatpush1.msra.mxu0 %v253
        %255 = vmatprep.subr.mxu0 0.0
        %v256 = vand.u32 %v225, 4294901760
        %257 = vmatpush1.msra.mxu0 %v256
        %258 = vmatprep.subr.mxu0 0.0
        %v259 = vand.u32 %v226, 4294901760
        %260 = vmatpush1.msra.mxu0 %v259
        %261 = vmatprep.subr.mxu0 0.0
        %v262 = vand.u32 %v227, 4294901760
        %263 = vmatpush1.msra.mxu0 %v262
        %264 = vmatprep.subr.mxu0 0.0
        %v265 = vand.u32 %v228, 4294901760
        %266 = vmatpush1.msra.mxu0 %v265
        %267 = vmatprep.subr.mxu0 0.0
        %v268 = vand.u32 %v229, 4294901760
        %269 = vmatpush1.msra.mxu0 %v268
        %270 = vmatprep.subr.mxu0 0.0
        %v271 = vand.u32 %v230, 4294901760
        %272 = vmatpush1.msra.mxu0 %v271
        %273 = vmatprep.subr.mxu0 0.0
        %v274 = vand.u32 %v231, 4294901760
        %275 = vmatpush1.msra.mxu0 %v274
        %276 = vmatprep.subr.mxu0 0.0
        %v277 = vand.u32 %v232, 4294901760
        %278 = vmatpush1.msra.mxu0 %v277
        %279 = vmatprep.subr.mxu0 0.0
        %v280 = vand.u32 %v233, 4294901760
        %281 = vmatpush1.msra.mxu0 %v280
        %282 = vmatprep.subr.mxu0 0.0
        %283 = vmatpush1.msra.mxu0 0.0
        %284 = vmatprep.subr.mxu0 0.0
        %285 = vmatpush1.msra.mxu0 0.0
        %286 = vmatprep.subr.mxu0 0.0
        %287 = vmatpush1.msra.mxu0 0.0
        %288 = vmatprep.subr.mxu0 0.0
        %289 = vmatpush1.msra.mxu0 0.0
        %290 = vmatprep.subr.mxu0 0.0
        %291 = vmatpush1.msra.mxu0 0.0
        %292 = vmatprep.subr.mxu0 0.0
        %293 = vmatpush1.msra.mxu0 0.0
        %294 = vmatprep.subr.mxu0 0.0
        %295 = vmatpush1.msra.mxu0 0.0
        %296 = vmatprep.subr.mxu0 0.0
        %297 = vmatpush1.msra.mxu0 0.0
        %298 = vmatprep.subr.mxu0 0.0
        %299 = vmatpush1.msra.mxu0 0.0
        %300 = vmatprep.subr.mxu0 0.0
        %301 = vmatpush1.msra.mxu0 0.0
        %302 = vmatprep.subr.mxu0 0.0
        %303 = vmatpush1.msra.mxu0 0.0
        %304 = vmatprep.subr.mxu0 0.0
        %305 = vmatpush1.msra.mxu0 0.0
        %306 = vmatprep.subr.mxu0 0.0
        %307 = vmatpush1.msra.mxu0 0.0
        %308 = vmatprep.subr.mxu0 0.0
        %309 = vmatpush1.msra.mxu0 0.0
        %310 = vmatprep.subr.mxu0 0.0
        %311 = vmatpush1.msra.mxu0 0.0
        %312 = vmatprep.subr.mxu0 0.0
        %313 = vmatpush1.msra.mxu0 0.0
        %314 = vmatprep.mubr.f32.mxu0 0.0
        %v315 = vand.u32 %v216, 4294901760
        %v316 = vsub.f32 %v216, %v315
        %v317 = vand.u32 %v316, 4294901760
        %v318 = vsub.f32 %v316, %v317
        %v319 = vand.u32 %v318, 4294901760
        %320 = vmatmul.mubr.f32.gmra.mrb[0].mxu0 %v319
        %v321 = vpop.f32.mrb[0].mxu0
        %v322 = vadd.f32 0.0, %v321
        %v323 = vpop.f32.mrb[0].mxu0
        %324 = vmatprep.mubr.f32.mxu0 0.0
        %v325 = vand.u32 %v217, 4294901760
        %v326 = vsub.f32 %v217, %v325
        %v327 = vand.u32 %v326, 4294901760
        %v328 = vsub.f32 %v326, %v327
        %v329 = vand.u32 %v328, 4294901760
        %330 = vmatmul.mubr.f32.gmra.mrb[0].mxu0 %v329
        %v331 = vpop.f32.mrb[0].mxu0
        %v332 = vadd.f32 0.0, %v331
        %v333 = vpop.f32.mrb[0].mxu0
        %334 = vdwg.mxu0
        %335 = vmatprep.subr.mxu0 0.0
        %v336 = vand.u32 %v218, 4294901760
        %v337 = vsub.f32 %v218, %v336
        %v338 = vand.u32 %v337, 4294901760
        %v339 = vsub.f32 %v337, %v338
        %v340 = vand.u32 %v339, 4294901760
        %341 = vmatpush1.msra.mxu0 %v340
        %342 = vmatprep.subr.mxu0 0.0
        %v343 = vand.u32 %v219, 4294901760
        %v344 = vsub.f32 %v219, %v343
        %v345 = vand.u32 %v344, 4294901760
        %v346 = vsub.f32 %v344, %v345
        %v347 = vand.u32 %v346, 4294901760
        %348 = vmatpush1.msra.mxu0 %v347
        %349 = vmatprep.subr.mxu0 0.0
        %v350 = vand.u32 %v220, 4294901760
        %v351 = vsub.f32 %v220, %v350
        %v352 = vand.u32 %v351, 4294901760
        %v353 = vsub.f32 %v351, %v352
        %v354 = vand.u32 %v353, 4294901760
        %355 = vmatpush1.msra.mxu0 %v354
        %356 = vmatprep.subr.mxu0 0.0
        %v357 = vand.u32 %v221, 4294901760
        %v358 = vsub.f32 %v221, %v357
        %v359 = vand.u32 %v358, 4294901760
        %v360 = vsub.f32 %v358, %v359
        %v361 = vand.u32 %v360, 4294901760
        %362 = vmatpush1.msra.mxu0 %v361
        %363 = vmatprep.subr.mxu0 0.0
        %v364 = vand.u32 %v222, 4294901760
        %v365 = vsub.f32 %v222, %v364
        %v366 = vand.u32 %v365, 4294901760
        %v367 = vsub.f32 %v365, %v366
        %v368 = vand.u32 %v367, 4294901760
        %369 = vmatpush1.msra.mxu0 %v368
        %370 = vmatprep.subr.mxu0 0.0
        %v371 = vand.u32 %v223, 4294901760
        %v372 = vsub.f32 %v223, %v371
        %v373 = vand.u32 %v372, 4294901760
        %v374 = vsub.f32 %v372, %v373
        %v375 = vand.u32 %v374, 4294901760
        %376 = vmatpush1.msra.mxu0 %v375
        %377 = vmatprep.subr.mxu0 0.0
        %v378 = vand.u32 %v224, 4294901760
        %v379 = vsub.f32 %v224, %v378
        %v380 = vand.u32 %v379, 4294901760
        %v381 = vsub.f32 %v379, %v380
        %v382 = vand.u32 %v381, 4294901760
        %383 = vmatpush1.msra.mxu0 %v382
        %384 = vmatprep.subr.mxu0 0.0
        %v385 = vand.u32 %v225, 4294901760
        %v386 = vsub.f32 %v225, %v385
        %v387 = vand.u32 %v386, 4294901760
        %v388 = vsub.f32 %v386, %v387
        %v389 = vand.u32 %v388, 4294901760
        %390 = vmatpush1.msra.mxu0 %v389
        %391 = vmatprep.subr.mxu0 0.0
        %v392 = vand.u32 %v226, 4294901760
        %v393 = vsub.f32 %v226, %v392
        %v394 = vand.u32 %v393, 4294901760
        %v395 = vsub.f32 %v393, %v394
        %v396 = vand.u32 %v395, 4294901760
        %397 = vmatpush1.msra.mxu0 %v396
        %398 = vmatprep.subr.mxu0 0.0
        %v399 = vand.u32 %v227, 4294901760
        %v400 = vsub.f32 %v227, %v399
        %v401 = vand.u32 %v400, 4294901760
        %v402 = vsub.f32 %v400, %v401
        %v403 = vand.u32 %v402, 4294901760
        %404 = vmatpush1.msra.mxu0 %v403
        %405 = vmatprep.subr.mxu0 0.0
        %v406 = vand.u32 %v228, 4294901760
        %v407 = vsub.f32 %v228, %v406
        %v408 = vand.u32 %v407, 4294901760
        %v409 = vsub.f32 %v407, %v408
        %v410 = vand.u32 %v409, 4294901760
        %411 = vmatpush1.msra.mxu0 %v410
        %412 = vmatprep.subr.mxu0 0.0
        %v413 = vand.u32 %v229, 4294901760
        %v414 = vsub.f32 %v229, %v413
        %v415 = vand.u32 %v414, 4294901760
        %v416 = vsub.f32 %v414, %v415
        %v417 = vand.u32 %v416, 4294901760
        %418 = vmatpush1.msra.mxu0 %v417
        %419 = vmatprep.subr.mxu0 0.0
        %v420 = vand.u32 %v230, 4294901760
        %v421 = vsub.f32 %v230, %v420
        %v422 = vand.u32 %v421, 4294901760
        %v423 = vsub.f32 %v421, %v422
        %v424 = vand.u32 %v423, 4294901760
        %425 = vmatpush1.msra.mxu0 %v424
        %426 = vmatprep.subr.mxu0 0.0
        %v427 = vand.u32 %v231, 4294901760
        %v428 = vsub.f32 %v231, %v427
        %v429 = vand.u32 %v428, 4294901760
        %v430 = vsub.f32 %v428, %v429
        %v431 = vand.u32 %v430, 4294901760
        %432 = vmatpush1.msra.mxu0 %v431
        %433 = vmatprep.subr.mxu0 0.0
        %v434 = vand.u32 %v232, 4294901760
        %v435 = vsub.f32 %v232, %v434
        %v436 = vand.u32 %v435, 4294901760
        %v437 = vsub.f32 %v435, %v436
        %v438 = vand.u32 %v437, 4294901760
        %439 = vmatpush1.msra.mxu0 %v438
        %440 = vmatprep.subr.mxu0 0.0
        %v441 = vand.u32 %v233, 4294901760
        %v442 = vsub.f32 %v233, %v441
        %v443 = vand.u32 %v442, 4294901760
        %v444 = vsub.f32 %v442, %v443
        %v445 = vand.u32 %v444, 4294901760
        %446 = vmatpush1.msra.mxu0 %v445
        %447 = vmatprep.subr.mxu0 0.0
        %448 = vmatpush1.msra.mxu0 0.0
        %449 = vmatprep.subr.mxu0 0.0
        %450 = vmatpush1.msra.mxu0 0.0
        %451 = vmatprep.subr.mxu0 0.0
        %452 = vmatpush1.msra.mxu0 0.0
        %453 = vmatprep.subr.mxu0 0.0
        %454 = vmatpush1.msra.mxu0 0.0
        %455 = vmatprep.subr.mxu0 0.0
        %456 = vmatpush1.msra.mxu0 0.0
        %457 = vmatprep.subr.mxu0 0.0
        %458 = vmatpush1.msra.mxu0 0.0
        %459 = vmatprep.subr.mxu0 0.0
        %460 = vmatpush1.msra.mxu0 0.0
        %461 = vmatprep.subr.mxu0 0.0
        %462 = vmatpush1.msra.mxu0 0.0
        %463 = vmatprep.subr.mxu0 0.0
        %464 = vmatpush1.msra.mxu0 0.0
        %465 = vmatprep.subr.mxu0 0.0
        %466 = vmatpush1.msra.mxu0 0.0
        %467 = vmatprep.subr.mxu0 0.0
        %468 = vmatpush1.msra.mxu0 0.0
        %469 = vmatprep.subr.mxu0 0.0
        %470 = vmatpush1.msra.mxu0 0.0
        %471 = vmatprep.subr.mxu0 0.0
        %472 = vmatpush1.msra.mxu0 0.0
        %473 = vmatprep.subr.mxu0 0.0
        %474 = vmatpush1.msra.mxu0 0.0
        %475 = vmatprep.subr.mxu0 0.0
        %476 = vmatpush1.msra.mxu0 0.0
        %477 = vmatprep.subr.mxu0 0.0
        %478 = vmatpush1.msra.mxu0 0.0
        %479 = vmatprep.mubr.f32.mxu0 0.0
        %v480 = vand.u32 %v216, 4294901760
        %481 = vmatmul.mubr.f32.gmra.mrb[0].mxu0 %v480
        %v482 = vpop.f32.mrb[0].mxu0
        %v483 = vadd.f32 %v322, %v482
        %v484 = vpop.f32.mrb[0].mxu0
        %485 = vmatprep.mubr.f32.mxu0 0.0
        %v486 = vand.u32 %v217, 4294901760
        %487 = vmatmul.mubr.f32.gmra.mrb[0].mxu0 %v486
        %v488 = vpop.f32.mrb[0].mxu0
        %v489 = vadd.f32 %v332, %v488
        %v490 = vpop.f32.mrb[0].mxu0
        %491 = vdwg.mxu0
        %492 = vmatprep.subr.mxu0 0.0
        %v493 = vand.u32 %v218, 4294901760
        %v494 = vsub.f32 %v218, %v493
        %495 = vmatpush1.msra.mxu0 %v494
        %496 = vmatprep.subr.mxu0 0.0
        %v497 = vand.u32 %v219, 4294901760
        %v498 = vsub.f32 %v219, %v497
        %499 = vmatpush1.msra.mxu0 %v498
        %500 = vmatprep.subr.mxu0 0.0
        %v501 = vand.u32 %v220, 4294901760
        %v502 = vsub.f32 %v220, %v501
        %503 = vmatpush1.msra.mxu0 %v502
        %504 = vmatprep.subr.mxu0 0.0
        %v505 = vand.u32 %v221, 4294901760
        %v506 = vsub.f32 %v221, %v505
        %507 = vmatpush1.msra.mxu0 %v506
        %508 = vmatprep.subr.mxu0 0.0
        %v509 = vand.u32 %v222, 4294901760
        %v510 = vsub.f32 %v222, %v509
        %511 = vmatpush1.msra.mxu0 %v510
        %512 = vmatprep.subr.mxu0 0.0
        %v513 = vand.u32 %v223, 4294901760
        %v514 = vsub.f32 %v223, %v513
        %515 = vmatpush1.msra.mxu0 %v514
        %516 = vmatprep.subr.mxu0 0.0
        %v517 = vand.u32 %v224, 4294901760
        %v518 = vsub.f32 %v224, %v517
        %519 = vmatpush1.msra.mxu0 %v518
        %520 = vmatprep.subr.mxu0 0.0
        %v521 = vand.u32 %v225, 4294901760
        %v522 = vsub.f32 %v225, %v521
        %523 = vmatpush1.msra.mxu0 %v522
        %524 = vmatprep.subr.mxu0 0.0
        %v525 = vand.u32 %v226, 4294901760
        %v526 = vsub.f32 %v226, %v525
        %527 = vmatpush1.msra.mxu0 %v526
        %528 = vmatprep.subr.mxu0 0.0
        %v529 = vand.u32 %v227, 4294901760
        %v530 = vsub.f32 %v227, %v529
        %531 = vmatpush1.msra.mxu0 %v530
        %532 = vmatprep.subr.mxu0 0.0
        %v533 = vand.u32 %v228, 4294901760
        %v534 = vsub.f32 %v228, %v533
        %535 = vmatpush1.msra.mxu0 %v534
        %536 = vmatprep.subr.mxu0 0.0
        %v537 = vand.u32 %v229, 4294901760
        %v538 = vsub.f32 %v229, %v537
        %539 = vmatpush1.msra.mxu0 %v538
        %540 = vmatprep.subr.mxu0 0.0
        %v541 = vand.u32 %v230, 4294901760
        %v542 = vsub.f32 %v230, %v541
        %543 = vmatpush1.msra.mxu0 %v542
        %544 = vmatprep.subr.mxu0 0.0
        %v545 = vand.u32 %v231, 4294901760
        %v546 = vsub.f32 %v231, %v545
        %547 = vmatpush1.msra.mxu0 %v546
        %548 = vmatprep.subr.mxu0 0.0
        %v549 = vand.u32 %v232, 4294901760
        %v550 = vsub.f32 %v232, %v549
        %551 = vmatpush1.msra.mxu0 %v550
        %552 = vmatprep.subr.mxu0 0.0
        %v553 = vand.u32 %v233, 4294901760
        %v554 = vsub.f32 %v233, %v553
        %555 = vmatpush1.msra.mxu0 %v554
        %556 = vmatprep.subr.mxu0 0.0
        %557 = vmatpush1.msra.mxu0 0.0
        %558 = vmatprep.subr.mxu0 0.0
        %559 = vmatpush1.msra.mxu0 0.0
        %560 = vmatprep.subr.mxu0 0.0
        %561 = vmatpush1.msra.mxu0 0.0
        %562 = vmatprep.subr.mxu0 0.0
        %563 = vmatpush1.msra.mxu0 0.0
        %564 = vmatprep.subr.mxu0 0.0
        %565 = vmatpush1.msra.mxu0 0.0
        %566 = vmatprep.subr.mxu0 0.0
        %567 = vmatpush1.msra.mxu0 0.0
        %568 = vmatprep.subr.mxu0 0.0
        %569 = vmatpush1.msra.mxu0 0.0
        %570 = vmatprep.subr.mxu0 0.0
        %571 = vmatpush1.msra.mxu0 0.0
        %572 = vmatprep.subr.mxu0 0.0
        %573 = vmatpush1.msra.mxu0 0.0
        %574 = vmatprep.subr.mxu0 0.0
        %575 = vmatpush1.msra.mxu0 0.0
        %576 = vmatprep.subr.mxu0 0.0
        %577 = vmatpush1.msra.mxu0 0.0
        %578 = vmatprep.subr.mxu0 0.0
        %579 = vmatpush1.msra.mxu0 0.0
        %580 = vmatprep.subr.mxu0 0.0
        %581 = vmatpush1.msra.mxu0 0.0
        %582 = vmatprep.subr.mxu0 0.0
        %583 = vmatpush1.msra.mxu0 0.0
        %584 = vmatprep.subr.mxu0 0.0
        %585 = vmatpush1.msra.mxu0 0.0
        %586 = vmatprep.subr.mxu0 0.0
        %587 = vmatpush1.msra.mxu0 0.0
        %588 = vmatprep.mubr.f32.mxu0 0.0
        %v589 = vand.u32 %v216, 4294901760
        %v590 = vsub.f32 %v216, %v589
        %591 = vmatmul.mubr.f32.gmra.mrb[0].mxu0 %v590
        %v592 = vpop.f32.mrb[0].mxu0
        %v593 = vadd.f32 %v483, %v592
        %v594 = vpop.f32.mrb[0].mxu0
        %595 = vmatprep.mubr.f32.mxu0 0.0
        %v596 = vand.u32 %v217, 4294901760
        %v597 = vsub.f32 %v217, %v596
        %598 = vmatmul.mubr.f32.gmra.mrb[0].mxu0 %v597
        %v599 = vpop.f32.mrb[0].mxu0
        %v600 = vadd.f32 %v489, %v599
        %v601 = vpop.f32.mrb[0].mxu0
        %602 = vdwg.mxu0
        %603 = vmatprep.subr.mxu0 0.0
        %v604 = vand.u32 %v218, 4294901760
        %605 = vmatpush1.msra.mxu0 %v604
        %606 = vmatprep.subr.mxu0 0.0
        %v607 = vand.u32 %v219, 4294901760
        %608 = vmatpush1.msra.mxu0 %v607
        %609 = vmatprep.subr.mxu0 0.0
        %v610 = vand.u32 %v220, 4294901760
        %611 = vmatpush1.msra.mxu0 %v610
        %612 = vmatprep.subr.mxu0 0.0
        %v613 = vand.u32 %v221, 4294901760
        %614 = vmatpush1.msra.mxu0 %v613
        %615 = vmatprep.subr.mxu0 0.0
        %v616 = vand.u32 %v222, 4294901760
        %617 = vmatpush1.msra.mxu0 %v616
        %618 = vmatprep.subr.mxu0 0.0
        %v619 = vand.u32 %v223, 4294901760
        %620 = vmatpush1.msra.mxu0 %v619
        %621 = vmatprep.subr.mxu0 0.0
        %v622 = vand.u32 %v224, 4294901760
        %623 = vmatpush1.msra.mxu0 %v622
        %624 = vmatprep.subr.mxu0 0.0
        %v625 = vand.u32 %v225, 4294901760
        %626 = vmatpush1.msra.mxu0 %v625
        %627 = vmatprep.subr.mxu0 0.0
        %v628 = vand.u32 %v226, 4294901760
        %629 = vmatpush1.msra.mxu0 %v628
        %630 = vmatprep.subr.mxu0 0.0
        %v631 = vand.u32 %v227, 4294901760
        %632 = vmatpush1.msra.mxu0 %v631
        %633 = vmatprep.subr.mxu0 0.0
        %v634 = vand.u32 %v228, 4294901760
        %635 = vmatpush1.msra.mxu0 %v634
        %636 = vmatprep.subr.mxu0 0.0
        %v637 = vand.u32 %v229, 4294901760
        %638 = vmatpush1.msra.mxu0 %v637
        %639 = vmatprep.subr.mxu0 0.0
        %v640 = vand.u32 %v230, 4294901760
        %641 = vmatpush1.msra.mxu0 %v640
        %642 = vmatprep.subr.mxu0 0.0
        %v643 = vand.u32 %v231, 4294901760
        %644 = vmatpush1.msra.mxu0 %v643
        %645 = vmatprep.subr.mxu0 0.0
        %v646 = vand.u32 %v232, 4294901760
        %647 = vmatpush1.msra.mxu0 %v646
        %648 = vmatprep.subr.mxu0 0.0
        %v649 = vand.u32 %v233, 4294901760
        %650 = vmatpush1.msra.mxu0 %v649
        %651 = vmatprep.subr.mxu0 0.0
        %652 = vmatpush1.msra.mxu0 0.0
        %653 = vmatprep.subr.mxu0 0.0
        %654 = vmatpush1.msra.mxu0 0.0
        %655 = vmatprep.subr.mxu0 0.0
        %656 = vmatpush1.msra.mxu0 0.0
        %657 = vmatprep.subr.mxu0 0.0
        %658 = vmatpush1.msra.mxu0 0.0
        %659 = vmatprep.subr.mxu0 0.0
        %660 = vmatpush1.msra.mxu0 0.0
        %661 = vmatprep.subr.mxu0 0.0
        %662 = vmatpush1.msra.mxu0 0.0
        %663 = vmatprep.subr.mxu0 0.0
        %664 = vmatpush1.msra.mxu0 0.0
        %665 = vmatprep.subr.mxu0 0.0
        %666 = vmatpush1.msra.mxu0 0.0
        %667 = vmatprep.subr.mxu0 0.0
        %668 = vmatpush1.msra.mxu0 0.0
        %669 = vmatprep.subr.mxu0 0.0
        %670 = vmatpush1.msra.mxu0 0.0
        %671 = vmatprep.subr.mxu0 0.0
        %672 = vmatpush1.msra.mxu0 0.0
        %673 = vmatprep.subr.mxu0 0.0
        %674 = vmatpush1.msra.mxu0 0.0
        %675 = vmatprep.subr.mxu0 0.0
        %676 = vmatpush1.msra.mxu0 0.0
        %677 = vmatprep.subr.mxu0 0.0
        %678 = vmatpush1.msra.mxu0 0.0
        %679 = vmatprep.subr.mxu0 0.0
        %680 = vmatpush1.msra.mxu0 0.0
        %681 = vmatprep.subr.mxu0 0.0
        %682 = vmatpush1.msra.mxu0 0.0
        %683 = vmatprep.mubr.f32.mxu0 0.0
        %v684 = vand.u32 %v216, 4294901760
        %v685 = vsub.f32 %v216, %v684
        %v686 = vand.u32 %v685, 4294901760
        %687 = vmatmul.mubr.f32.gmra.mrb[0].mxu0 %v686
        %v688 = vpop.f32.mrb[0].mxu0
        %v689 = vadd.f32 %v593, %v688
        %v690 = vpop.f32.mrb[0].mxu0
        %691 = vmatprep.mubr.f32.mxu0 0.0
        %v692 = vand.u32 %v217, 4294901760
        %v693 = vsub.f32 %v217, %v692
        %v694 = vand.u32 %v693, 4294901760
        %695 = vmatmul.mubr.f32.gmra.mrb[0].mxu0 %v694
        %v696 = vpop.f32.mrb[0].mxu0
        %v697 = vadd.f32 %v600, %v696
        %v698 = vpop.f32.mrb[0].mxu0
        %699 = vdwg.mxu0
        %700 = vmatprep.subr.mxu0 0.0
        %v701 = vand.u32 %v218, 4294901760
        %v702 = vsub.f32 %v218, %v701
        %v703 = vand.u32 %v702, 4294901760
        %704 = vmatpush1.msra.mxu0 %v703
        %705 = vmatprep.subr.mxu0 0.0
        %v706 = vand.u32 %v219, 4294901760
        %v707 = vsub.f32 %v219, %v706
        %v708 = vand.u32 %v707, 4294901760
        %709 = vmatpush1.msra.mxu0 %v708
        %710 = vmatprep.subr.mxu0 0.0
        %v711 = vand.u32 %v220, 4294901760
        %v712 = vsub.f32 %v220, %v711
        %v713 = vand.u32 %v712, 4294901760
        %714 = vmatpush1.msra.mxu0 %v713
        %715 = vmatprep.subr.mxu0 0.0
        %v716 = vand.u32 %v221, 4294901760
        %v717 = vsub.f32 %v221, %v716
        %v718 = vand.u32 %v717, 4294901760
        %719 = vmatpush1.msra.mxu0 %v718
        %720 = vmatprep.subr.mxu0 0.0
        %v721 = vand.u32 %v222, 4294901760
        %v722 = vsub.f32 %v222, %v721
        %v723 = vand.u32 %v722, 4294901760
        %724 = vmatpush1.msra.mxu0 %v723
        %725 = vmatprep.subr.mxu0 0.0
        %v726 = vand.u32 %v223, 4294901760
        %v727 = vsub.f32 %v223, %v726
        %v728 = vand.u32 %v727, 4294901760
        %729 = vmatpush1.msra.mxu0 %v728
        %730 = vmatprep.subr.mxu0 0.0
        %v731 = vand.u32 %v224, 4294901760
        %v732 = vsub.f32 %v224, %v731
        %v733 = vand.u32 %v732, 4294901760
        %734 = vmatpush1.msra.mxu0 %v733
        %735 = vmatprep.subr.mxu0 0.0
        %v736 = vand.u32 %v225, 4294901760
        %v737 = vsub.f32 %v225, %v736
        %v738 = vand.u32 %v737, 4294901760
        %739 = vmatpush1.msra.mxu0 %v738
        %740 = vmatprep.subr.mxu0 0.0
        %v741 = vand.u32 %v226, 4294901760
        %v742 = vsub.f32 %v226, %v741
        %v743 = vand.u32 %v742, 4294901760
        %744 = vmatpush1.msra.mxu0 %v743
        %745 = vmatprep.subr.mxu0 0.0
        %v746 = vand.u32 %v227, 4294901760
        %v747 = vsub.f32 %v227, %v746
        %v748 = vand.u32 %v747, 4294901760
        %749 = vmatpush1.msra.mxu0 %v748
        %750 = vmatprep.subr.mxu0 0.0
        %v751 = vand.u32 %v228, 4294901760
        %v752 = vsub.f32 %v228, %v751
        %v753 = vand.u32 %v752, 4294901760
        %754 = vmatpush1.msra.mxu0 %v753
        %755 = vmatprep.subr.mxu0 0.0
        %v756 = vand.u32 %v229, 4294901760
        %v757 = vsub.f32 %v229, %v756
        %v758 = vand.u32 %v757, 4294901760
        %759 = vmatpush1.msra.mxu0 %v758
        %760 = vmatprep.subr.mxu0 0.0
        %v761 = vand.u32 %v230, 4294901760
        %v762 = vsub.f32 %v230, %v761
        %v763 = vand.u32 %v762, 4294901760
        %764 = vmatpush1.msra.mxu0 %v763
        %765 = vmatprep.subr.mxu0 0.0
        %v766 = vand.u32 %v231, 4294901760
        %v767 = vsub.f32 %v231, %v766
        %v768 = vand.u32 %v767, 4294901760
        %769 = vmatpush1.msra.mxu0 %v768
        %770 = vmatprep.subr.mxu0 0.0
        %v771 = vand.u32 %v232, 4294901760
        %v772 = vsub.f32 %v232, %v771
        %v773 = vand.u32 %v772, 4294901760
        %774 = vmatpush1.msra.mxu0 %v773
        %775 = vmatprep.subr.mxu0 0.0
        %v776 = vand.u32 %v233, 4294901760
        %v777 = vsub.f32 %v233, %v776
        %v778 = vand.u32 %v777, 4294901760
        %779 = vmatpush1.msra.mxu0 %v778
        %780 = vmatprep.subr.mxu0 0.0
        %781 = vmatpush1.msra.mxu0 0.0
        %782 = vmatprep.subr.mxu0 0.0
        %783 = vmatpush1.msra.mxu0 0.0
        %784 = vmatprep.subr.mxu0 0.0
        %785 = vmatpush1.msra.mxu0 0.0
        %786 = vmatprep.subr.mxu0 0.0
        %787 = vmatpush1.msra.mxu0 0.0
        %788 = vmatprep.subr.mxu0 0.0
        %789 = vmatpush1.msra.mxu0 0.0
        %790 = vmatprep.subr.mxu0 0.0
        %791 = vmatpush1.msra.mxu0 0.0
        %792 = vmatprep.subr.mxu0 0.0
        %793 = vmatpush1.msra.mxu0 0.0
        %794 = vmatprep.subr.mxu0 0.0
        %795 = vmatpush1.msra.mxu0 0.0
        %796 = vmatprep.subr.mxu0 0.0
        %797 = vmatpush1.msra.mxu0 0.0
        %798 = vmatprep.subr.mxu0 0.0
        %799 = vmatpush1.msra.mxu0 0.0
        %800 = vmatprep.subr.mxu0 0.0
        %801 = vmatpush1.msra.mxu0 0.0
        %802 = vmatprep.subr.mxu0 0.0
        %803 = vmatpush1.msra.mxu0 0.0
        %804 = vmatprep.subr.mxu0 0.0
        %805 = vmatpush1.msra.mxu0 0.0
        %806 = vmatprep.subr.mxu0 0.0
        %807 = vmatpush1.msra.mxu0 0.0
        %808 = vmatprep.subr.mxu0 0.0
        %809 = vmatpush1.msra.mxu0 0.0
        %810 = vmatprep.subr.mxu0 0.0
        %811 = vmatpush1.msra.mxu0 0.0
        %812 = vmatprep.mubr.f32.mxu0 0.0
        %v813 = vand.u32 %v216, 4294901760
        %814 = vmatmul.mubr.f32.gmra.mrb[0].mxu0 %v813
        %v815 = vpop.f32.mrb[0].mxu0
        %v816 = vadd.f32 %v689, %v815
        %v817 = vpop.f32.mrb[0].mxu0
        %818 = vmatprep.mubr.f32.mxu0 0.0
        %v819 = vand.u32 %v217, 4294901760
        %820 = vmatmul.mubr.f32.gmra.mrb[0].mxu0 %v819
        %v821 = vpop.f32.mrb[0].mxu0
        %v822 = vadd.f32 %v697, %v821
        %v823 = vpop.f32.mrb[0].mxu0
        %824 = vdwg.mxu0
        %825 = vmatprep.subr.mxu0 0.0
        %v826 = vand.u32 %v218, 4294901760
        %827 = vmatpush1.msra.mxu0 %v826
        %828 = vmatprep.subr.mxu0 0.0
        %v829 = vand.u32 %v219, 4294901760
        %830 = vmatpush1.msra.mxu0 %v829
        %831 = vmatprep.subr.mxu0 0.0
        %v832 = vand.u32 %v220, 4294901760
        %833 = vmatpush1.msra.mxu0 %v832
        %834 = vmatprep.subr.mxu0 0.0
        %v835 = vand.u32 %v221, 4294901760
        %836 = vmatpush1.msra.mxu0 %v835
        %837 = vmatprep.subr.mxu0 0.0
        %v838 = vand.u32 %v222, 4294901760
        %839 = vmatpush1.msra.mxu0 %v838
        %840 = vmatprep.subr.mxu0 0.0
        %v841 = vand.u32 %v223, 4294901760
        %842 = vmatpush1.msra.mxu0 %v841
        %843 = vmatprep.subr.mxu0 0.0
        %v844 = vand.u32 %v224, 4294901760
        %845 = vmatpush1.msra.mxu0 %v844
        %846 = vmatprep.subr.mxu0 0.0
        %v847 = vand.u32 %v225, 4294901760
        %848 = vmatpush1.msra.mxu0 %v847
        %849 = vmatprep.subr.mxu0 0.0
        %v850 = vand.u32 %v226, 4294901760
        %851 = vmatpush1.msra.mxu0 %v850
        %852 = vmatprep.subr.mxu0 0.0
        %v853 = vand.u32 %v227, 4294901760
        %854 = vmatpush1.msra.mxu0 %v853
        %855 = vmatprep.subr.mxu0 0.0
        %v856 = vand.u32 %v228, 4294901760
        %857 = vmatpush1.msra.mxu0 %v856
        %858 = vmatprep.subr.mxu0 0.0
        %v859 = vand.u32 %v229, 4294901760
        %860 = vmatpush1.msra.mxu0 %v859
        %861 = vmatprep.subr.mxu0 0.0
        %v862 = vand.u32 %v230, 4294901760
        %863 = vmatpush1.msra.mxu0 %v862
        %864 = vmatprep.subr.mxu0 0.0
        %v865 = vand.u32 %v231, 4294901760
        %866 = vmatpush1.msra.mxu0 %v865
        %867 = vmatprep.subr.mxu0 0.0
        %v868 = vand.u32 %v232, 4294901760
        %869 = vmatpush1.msra.mxu0 %v868
        %870 = vmatprep.subr.mxu0 0.0
        %v871 = vand.u32 %v233, 4294901760
        %872 = vmatpush1.msra.mxu0 %v871
        %873 = vmatprep.subr.mxu0 0.0
        %874 = vmatpush1.msra.mxu0 0.0
        %875 = vmatprep.subr.mxu0 0.0
        %876 = vmatpush1.msra.mxu0 0.0
        %877 = vmatprep.subr.mxu0 0.0
        %878 = vmatpush1.msra.mxu0 0.0
        %879 = vmatprep.subr.mxu0 0.0
        %880 = vmatpush1.msra.mxu0 0.0
        %881 = vmatprep.subr.mxu0 0.0
        %882 = vmatpush1.msra.mxu0 0.0
        %883 = vmatprep.subr.mxu0 0.0
        %884 = vmatpush1.msra.mxu0 0.0
        %885 = vmatprep.subr.mxu0 0.0
        %886 = vmatpush1.msra.mxu0 0.0
        %887 = vmatprep.subr.mxu0 0.0
        %888 = vmatpush1.msra.mxu0 0.0
        %889 = vmatprep.subr.mxu0 0.0
        %890 = vmatpush1.msra.mxu0 0.0
        %891 = vmatprep.subr.mxu0 0.0
        %892 = vmatpush1.msra.mxu0 0.0
        %893 = vmatprep.subr.mxu0 0.0
        %894 = vmatpush1.msra.mxu0 0.0
        %895 = vmatprep.subr.mxu0 0.0
        %896 = vmatpush1.msra.mxu0 0.0
        %897 = vmatprep.subr.mxu0 0.0
        %898 = vmatpush1.msra.mxu0 0.0
        %899 = vmatprep.subr.mxu0 0.0
        %900 = vmatpush1.msra.mxu0 0.0
        %901 = vmatprep.subr.mxu0 0.0
        %902 = vmatpush1.msra.mxu0 0.0
        %903 = vmatprep.subr.mxu0 0.0
        %904 = vmatpush1.msra.mxu0 0.0
        %905 = vmatprep.mubr.f32.mxu0 0.0
        %v906 = vand.u32 %v216, 4294901760
        %907 = vmatmul.mubr.f32.gmra.mrb[0].mxu0 %v906
        %v908 = vpop.f32.mrb[0].mxu0
        %v909 = vadd.f32 %v816, %v908
        %v910 = vpop.f32.mrb[0].mxu0
        %911 = vmatprep.mubr.f32.mxu0 0.0
        %v912 = vand.u32 %v217, 4294901760
        %913 = vmatmul.mubr.f32.gmra.mrb[0].mxu0 %v912
        %v914 = vpop.f32.mrb[0].mxu0
        %v915 = vadd.f32 %v822, %v914
        %v916 = vpop.f32.mrb[0].mxu0
        %917 = vdwg.mxu0
        %918 = vst [vmem:[%s190] sm:$0xff] %v909
        %919 = vst [vmem:[%s190 + $0x8] sm:$0xff] %v915
        %s920 = sand.u32 %s93, 1
        %s921 = scalar_lea.sflag [#allocation4], %s920
        %s922 = sand.u32 %s93, 1
        %s923 = smul.addr %s922, 16
        %s924 = scalar_lea.vmem [#allocation5], %s923
        // Predicated region
        $region33: #{tpu_custom_call.1} parent=27 // pred_check
          %p925 = pneg %p103
        $region34: #{tpu_custom_call.1} parent=27 // pred_check_branch
          %927 = sbr.rel (%p925) target = $region36
        $region35: #{tpu_custom_call.1} parent=27 // pred_region
          %s928 = smul.u32 2, %s24
          %s929 = ssub.s32 7, %s928
          %p930 = scmp.lt.s32.totalorder %s929, 2
          %s931 = scalar_select %p930, %s929, 2
          %s932 = smul.u32 128, %s931
          %s934 = ssub.s32 256, %s932
          %935 = vsyncadd %s921, %s934
          %p936 = scmp.ne.s32.totalorder 0, %s932
          %s937 = smul.addr %s928, 2
          %s938 = sadd.s32 %s23, %s937
          %s939 = smul.addr %s938, 128
          %s940 = scalar_lea.hbm %s2, %s939
          %s941 = smul.u32 8, %s931
          %s942 = sshll.u32 %s924, 4
          %s943 = int_to_ptr.vmem [resolvable:$true] %s942
          %s944 = sshll.u32 %s941, 4
          %948 = dma.vmem_to_hbm [thread:$0]  (%p936), %s943, %s944, %s940, %s921, 128, 256, 8
        $region36: #{tpu_custom_call.1} parent=27 // pred_fallthru
          _
      $region28: #{tpu_custom_call.1} parent=5 // pred_fallthru
        _
      %p949 = scmp.le.s32.totalorder 2, %s14
      // Predicated region
      $region37: #{tpu_custom_call.1} parent=5 // pred_check
        %p950 = pneg %p949
      $region38: #{tpu_custom_call.1} parent=5 // pred_check_branch
        %952 = sbr.rel (%p950) target = $region40
      $region39: #{tpu_custom_call.1} parent=5 // pred_region
        %s953 = ssub.s32 %s14, 2
        // Predicated region
        $region41: #{tpu_custom_call.1} parent=39 // pred_check
          %p954 = pneg %p109
        $region42: #{tpu_custom_call.1} parent=39 // pred_check_branch
          %956 = sbr.rel (%p954) target = $region44
        $region43: #{tpu_custom_call.1} parent=39 // pred_region
          %s957 = sand.u32 %s94, 1
          %s958 = scalar_lea.sflag [#allocation4], %s957
          %s959 = sand.u32 %s94, 1
          %s960 = smul.addr %s959, 16
          %s961 = scalar_lea.vmem [#allocation5], %s960
          %962 = dma.done %s958, 256
        $region44: #{tpu_custom_call.1} parent=39 // pred_fallthru
          _
      $region40: #{tpu_custom_call.1} parent=5 // pred_fallthru
        _
    $region6: #{tpu_custom_call.1} parent=1 // loop_footer
      %s18 = sadd.s32 1, %s14
    $region7: #{tpu_custom_call.1} parent=1 // loop_footer_branch
      %13 = sbr.rel target = $region3
    $region8: #{tpu_custom_call.1} parent=1 // loop_exit
      _
    %963 = vsyncpa [#allocation3], 1
    %s964 = scalar_lea.sflag [#allocation3], 1
    %965 = vsyncpa %s964, 1
    %966 = vsyncpa [#allocation4], 1
    %s967 = scalar_lea.sflag [#allocation4], 1
    %968 = vsyncpa %s967, 1

</llo_original>
